<compile_context>
chip_gen: v5e
topology: v5e:2x2
jax: 0.10.0
libtpu: 0.0.40
codegen_flags: <defaults>
</compile_context>

<pallas_src>
import math

import jax
import jax.numpy as jnp
from jax.experimental import pallas as pl
from jax.experimental.pallas import tpu as pltpu

# ---------------- small, forward-consistent hyper-parameters -----------------
DIM = 32          # embedding dim
HIDDEN = 64       # mlp hidden dim
BATCH = 2
SEQ = 8

LANES = 128                       # vreg lane width: padded hidden/output lane count
ROW_W1 = 0                        # slab rows [0, DIM):              W1 (zero-padded to 128 lanes)
ROW_W2 = DIM                      # slab rows [DIM, DIM+LANES):      W2 (zero-padded rows/lanes)
ROW_B1 = DIM + LANES              # slab row  DIM+LANES:             b1 (zero-padded to 128 lanes)
ROW_B2 = DIM + LANES + 1          # slab row  DIM+LANES+1:           b2 (zero-padded to 128 lanes)
SLAB_ROWS = DIM + LANES + 8       # round bias block up to a sublane (8-row) multiple


def feedforward_kernel(x_ref, slab_ref, o_ref):
    """(B*N, DIM) -> Linear(DIM,H) -> GELU -> Linear(H,DIM).  Dropout(p=0.0) = identity."""
    x = x_ref[...]                                  # (rows, DIM)
    w1 = slab_ref[ROW_W1:ROW_W1 + DIM, :]           # (DIM, 128), lanes [HIDDEN:) zero
    w2 = slab_ref[ROW_W2:ROW_W2 + LANES, :]         # (128, 128), rows [HIDDEN:) & lanes [DIM:) zero
    b1 = slab_ref[ROW_B1:ROW_B1 + 1, :]             # (1, 128)
    b2 = slab_ref[ROW_B2:ROW_B2 + 1, :]             # (1, 128)

    h = jnp.dot(x, w1, preferred_element_type=jnp.float32) + b1     # (rows, 128)

    # TODO(synk): torch.nn.GELU() defaults to the exact erf-based GELU; erf lowering
    # is not guaranteed in Mosaic, so the tanh approximation is used (~1e-3 rel err).
    c = math.sqrt(2.0 / math.pi)
    h = 0.5 * h * (1.0 + jnp.tanh(c * (h + 0.044715 * h * h * h)))

    y = jnp.dot(h, w2, preferred_element_type=jnp.float32) + b2     # (rows, 128)
    o_ref[...] = y                                  # unmasked, lane-dense whole-vreg store


def make_feedforward_call(rows):
    vmem = pl.BlockSpec(memory_space=pltpu.MemorySpace.VMEM)
    # Gridless call: whole operands DMA'd once into VMEM, no pipeline machinery.
    return pl.pallas_call(
        feedforward_kernel,
        out_shape=jax.ShapeDtypeStruct((rows, LANES), jnp.float32),
        in_specs=[vmem, vmem],
        out_specs=vmem,
    )


def init_params(key):
    """Deterministic synthetic weights (Linear weights already in (in, out) layout)."""
    k1, k2, k3, k4 = jax.random.split(key, 4)
    w1 = 0.05 * jax.random.normal(k1, (DIM, HIDDEN), jnp.float32)
    b1 = 0.01 * jax.random.normal(k2, (HIDDEN,), jnp.float32)
    w2 = 0.05 * jax.random.normal(k3, (HIDDEN, DIM), jnp.float32)
    b2 = 0.01 * jax.random.normal(k4, (DIM,), jnp.float32)

    # One-time (init-time) packing of all parameters into a single 128-lane-wide,
    # zero-padded slab -> a single DMA stream / single VMEM buffer per call.
    slab = jnp.zeros((SLAB_ROWS, LANES), jnp.float32)
    slab = slab.at[ROW_W1:ROW_W1 + DIM, 0:HIDDEN].set(w1)
    slab = slab.at[ROW_W2:ROW_W2 + HIDDEN, 0:DIM].set(w2)
    slab = slab.at[ROW_B1, 0:HIDDEN].set(b1)
    slab = slab.at[ROW_B2, 0:DIM].set(b2)
    return {"w1": w1, "b1": b1, "w2": w2, "b2": b2, "slab": slab}


def feedforward_forward(x, params):
    B, N, D = x.shape
    rows = B * N
    y = make_feedforward_call(rows)(x.reshape(rows, D), params["slab"])
    return y[:, :D].reshape(B, N, D)         # drop the zero lane padding


def feedforward_reference(x, params):
    """Pure-JAX reference (same tanh-GELU approximation as the kernel), f32-exact matmuls."""
    hi = jax.lax.Precision.HIGHEST
    h = jnp.matmul(x, params["w1"], precision=hi) + params["b1"]
    c = math.sqrt(2.0 / math.pi)
    h = 0.5 * h * (1.0 + jnp.tanh(c * (h + 0.044715 * h ** 3)))
    return jnp.matmul(h, params["w2"], precision=hi) + params["b2"]


if __name__ == "__main__":
    key = jax.random.PRNGKey(0)
    kx, kp = jax.random.split(key)
    x = jax.random.normal(kx, (BATCH, SEQ, DIM), jnp.float32)
    params = init_params(kp)

    out = feedforward_forward(x, params)
    out = jax.block_until_ready(out)

    ref = feedforward_reference(x, params)
    assert out.shape == (BATCH, SEQ, DIM)
    assert bool(jnp.all(jnp.isfinite(out)))
    # Tolerance covers MXU-vs-XLA f32 matmul pass-count differences; still far tighter
    # than any structural error (a dropped bias alone would be ~1e-2).
    assert bool(jnp.allclose(out, ref, atol=2e-4, rtol=2e-4))
    print("KERNEL_OK")
</pallas_src>

<mosaic_0001>
module attributes {stable_mosaic.version = 11 : i64} {
  func.func @feedforward_kernel(%arg0: memref<16x32xf32, #tpu.memory_space<vmem>>, %arg1: memref<168x128xf32, #tpu.memory_space<vmem>>, %arg2: memref<16x128xf32, #tpu.memory_space<vmem>>) attributes {dimension_semantics = [], scalar_prefetch = 0 : i64, scratch_operands = 0 : i64, tpu.core_type = #tpu.core_type<tc>} {
    %c0 = arith.constant 0 : index
    %c0_0 = arith.constant 0 : index
    %0 = vector.load %arg0[%c0, %c0_0] : memref<16x32xf32, #tpu.memory_space<vmem>>, vector<16x32xf32>
    %c0_1 = arith.constant 0 : index
    %c0_2 = arith.constant 0 : index
    %1 = vector.load %arg1[%c0_1, %c0_2] : memref<168x128xf32, #tpu.memory_space<vmem>>, vector<32x128xf32>
    %c32 = arith.constant 32 : index
    %c0_3 = arith.constant 0 : index
    %2 = vector.load %arg1[%c32, %c0_3] : memref<168x128xf32, #tpu.memory_space<vmem>>, vector<128x128xf32>
    %c160 = arith.constant 160 : index
    %c0_4 = arith.constant 0 : index
    %3 = vector.load %arg1[%c160, %c0_4] : memref<168x128xf32, #tpu.memory_space<vmem>>, vector<1x128xf32>
    %c161 = arith.constant 161 : index
    %c0_5 = arith.constant 0 : index
    %4 = vector.load %arg1[%c161, %c0_5] : memref<168x128xf32, #tpu.memory_space<vmem>>, vector<1x128xf32>
    %cst = arith.constant dense<0.000000e+00> : vector<16x128xf32>
    %5 = tpu.matmul %0, %1, %cst {dimension_numbers = #tpu.dot_dimension_numbers<[1], [0], [0], [1], [0, 0, 1, 1], [], []>} : vector<16x32xf32>, vector<32x128xf32>, vector<16x128xf32> -> vector<16x128xf32>
    %6 = vector.broadcast %3 : vector<1x128xf32> to vector<16x128xf32>
    %7 = arith.addf %5, %6 : vector<16x128xf32>
    %cst_6 = arith.constant 5.000000e-01 : f32
    %8 = vector.broadcast %cst_6 : f32 to vector<16x128xf32>
    %9 = arith.mulf %8, %7 : vector<16x128xf32>
    %cst_7 = arith.constant 4.471500e-02 : f32
    %10 = vector.broadcast %cst_7 : f32 to vector<16x128xf32>
    %11 = arith.mulf %10, %7 : vector<16x128xf32>
    %12 = arith.mulf %11, %7 : vector<16x128xf32>
    %13 = arith.mulf %12, %7 : vector<16x128xf32>
    %14 = arith.addf %7, %13 : vector<16x128xf32>
    %cst_8 = arith.constant 0.797884583 : f32
    %15 = vector.broadcast %cst_8 : f32 to vector<16x128xf32>
    %16 = arith.mulf %15, %14 : vector<16x128xf32>
    %17 = math.tanh %16 : vector<16x128xf32>
    %cst_9 = arith.constant 1.000000e+00 : f32
    %18 = vector.broadcast %cst_9 : f32 to vector<16x128xf32>
    %19 = arith.addf %18, %17 : vector<16x128xf32>
    %20 = arith.mulf %9, %19 : vector<16x128xf32>
    %cst_10 = arith.constant dense<0.000000e+00> : vector<16x128xf32>
    %21 = tpu.matmul %20, %2, %cst_10 {dimension_numbers = #tpu.dot_dimension_numbers<[1], [0], [0], [1], [0, 0, 1, 1], [], []>} : vector<16x128xf32>, vector<128x128xf32>, vector<16x128xf32> -> vector<16x128xf32>
    %22 = vector.broadcast %4 : vector<1x128xf32> to vector<16x128xf32>
    %23 = arith.addf %21, %22 : vector<16x128xf32>
    %c0_11 = arith.constant 0 : index
    %c0_12 = arith.constant 0 : index
    %24 = vector.load %arg2[%c0_11, %c0_12] : memref<16x128xf32, #tpu.memory_space<vmem>>, vector<16x128xf32>
    tpu.vector_store %arg2[%c0_11, %c0_12], %23 {strides = array<i32>} : memref<16x128xf32, #tpu.memory_space<vmem>>, vector<16x128xf32>,
    return
  }
}

</mosaic_0001>

<llo_original>
// kernel: tpu_custom_call.1
$region0: #{tpu_custom_call.1}
  #allocation0 [shape = 'u32[]', space=smem, size = 0x4, offset = 0x4, fixed_abs, tag = 'smem constant byte address 0x4 - core index']
  #allocation1 [shape = 'u32[72,128]{1,0:T(1,128)}', space=vmem, size = 0x9000, scoped, tag = 'internal scratch']
  %s0 = inlined_call_operand.hbm [shape: f32[16,32], index: 0, kind: input, shape index: {}]
  %s1 = inlined_call_operand.hbm [shape: f32[168,128], index: 1, kind: input, shape index: {}]
  %s2 = inlined_call_operand.hbm [shape: f32[16,128], index: 2, kind: output, shape index: {}]
  %s3 = sld [smem:[#allocation0]]
  $region26: #{tpu_custom_call.1} parent=0
    _
  %s5 = ssub.s32 1, %s3
  %s6 = scalar_select 0, %s5, %s3
  $region1: #{tpu_custom_call.1} parent=0
    #allocation2 [shape = 'u8[8192]{0}', space=vmem, size = 0x2000, scoped, tag = 'input window, operand 0, single buffered']
    #allocation3 [shape = 's32[1]{0}', space=sflag, size = 0x4, scoped, tag = 'scoped memory for tpu_custom_call.1']
    #allocation4 [shape = 's32[1]{0}', space=sflag, size = 0x4, scoped, tag = 'scoped memory for tpu_custom_call.1']
    #allocation5 [shape = 'u8[86016]{0}', space=vmem, size = 0x15000, scoped, tag = 'input window, operand 1, single buffered']
    #allocation6 [shape = 's32[1]{0}', space=sflag, size = 0x4, scoped, tag = 'scoped memory for tpu_custom_call.1']
    #allocation7 [shape = 'u8[8192]{0}', space=vmem, size = 0x2000, scoped, tag = 'output window, operand 0, single buffered']
    %7 = vsyncpa [#allocation3], 0
    %8 = vsyncpa [#allocation6], 0
    %9 = vsyncpa [#allocation4], 0
    // Predicated region
    $region2: #{tpu_custom_call.1} parent=1 // pred_check
      _
    $region3: #{tpu_custom_call.1} parent=1 // pred_check_branch
      %11 = sbr.rel (0) target = $region5
    $region4: #{tpu_custom_call.1} parent=1 // pred_region
      %13 = vsyncadd [#allocation3], 0
      %s14 = sshll.u32 %s0, 4
      %s15 = int_to_ptr.hbm [resolvable:$true] %s14
      %s16 = sshll.u32 [#allocation2], 4
      %s17 = int_to_ptr.vmem [resolvable:$true] %s16
      %22 = dma.hbm_to_vmem [thread:$0]  %s15, 256, %s17, [#allocation3], 128, 128, 8
    $region5: #{tpu_custom_call.1} parent=1 // pred_fallthru
      _
    // Predicated region
    $region6: #{tpu_custom_call.1} parent=1 // pred_check
      _
    $region7: #{tpu_custom_call.1} parent=1 // pred_check_branch
      %24 = sbr.rel (0) target = $region9
    $region8: #{tpu_custom_call.1} parent=1 // pred_region
      %26 = vsyncadd [#allocation6], 0
      %s27 = sshll.u32 %s1, 4
      %s28 = int_to_ptr.hbm [resolvable:$true] %s27
      %s29 = sshll.u32 [#allocation5], 4
      %s30 = int_to_ptr.vmem [resolvable:$true] %s29
      %35 = dma.hbm_to_vmem [thread:$0]  %s28, 2688, %s30, [#allocation6], 128, 128, 8
    $region9: #{tpu_custom_call.1} parent=1 // pred_fallthru
      _
    // Predicated region
    $region10: #{tpu_custom_call.1} parent=1 // pred_check
      _
    $region11: #{tpu_custom_call.1} parent=1 // pred_check_branch
      %37 = sbr.rel (0) target = $region13
    $region12: #{tpu_custom_call.1} parent=1 // pred_region
      %39 = dma.done [#allocation3], 256
    $region13: #{tpu_custom_call.1} parent=1 // pred_fallthru
      _
    // Predicated region
    $region14: #{tpu_custom_call.1} parent=1 // pred_check
      _
    $region15: #{tpu_custom_call.1} parent=1 // pred_check_branch
      %41 = sbr.rel (0) target = $region17
    $region16: #{tpu_custom_call.1} parent=1 // pred_region
      %43 = dma.done [#allocation6], 2688
    $region17: #{tpu_custom_call.1} parent=1 // pred_fallthru
      _
    %v44 = vld [vmem:[#allocation2] sm:$0xff]
    %v45 = vld [vmem:[#allocation2 + $0x8] sm:$0xff]
    %v46 = vld [vmem:[#allocation5] sm:$0xff]
    %v47 = vld [vmem:[#allocation5 + $0x8] sm:$0xff]
    %v48 = vld [vmem:[#allocation5 + $0x10] sm:$0xff]
    %v49 = vld [vmem:[#allocation5 + $0x18] sm:$0xff]
    %v50 = vld [vmem:[#allocation5 + $0x20] sm:$0xff]
    %v51 = vld [vmem:[#allocation5 + $0x28] sm:$0xff]
    %v52 = vld [vmem:[#allocation5 + $0x30] sm:$0xff]
    %v53 = vld [vmem:[#allocation5 + $0x38] sm:$0xff]
    %v54 = vld [vmem:[#allocation5 + $0x40] sm:$0xff]
    %v55 = vld [vmem:[#allocation5 + $0x48] sm:$0xff]
    %v56 = vld [vmem:[#allocation5 + $0x50] sm:$0xff]
    %v57 = vld [vmem:[#allocation5 + $0x58] sm:$0xff]
    %v58 = vld [vmem:[#allocation5 + $0x60] sm:$0xff]
    %v59 = vld [vmem:[#allocation5 + $0x68] sm:$0xff]
    %v60 = vld [vmem:[#allocation5 + $0x70] sm:$0xff]
    %v61 = vld [vmem:[#allocation5 + $0x78] sm:$0xff]
    %v62 = vld [vmem:[#allocation5 + $0x80] sm:$0xff]
    %v63 = vld [vmem:[#allocation5 + $0x88] sm:$0xff]
    %v64 = vld [vmem:[#allocation5 + $0x90] sm:$0xff]
    %v65 = vld [vmem:[#allocation5 + $0x98] sm:$0xff]
    %v66 = vld [vmem:[#allocation5 + $0xa0] sm:$0x1]
    %v67 = vld [vmem:[#allocation5 + $0xa1] sm:$0x1]
    %v68 = vperm.slane %v66, 0
    %vm69 = vcmask 261120
    %v71 = vsel %vm69, %v44, 0
    %v74 = vsel %vm69, %v45, 0
    %76 = vmatpush.msra.mxu0 0.0
    %77 = vmatpush.msra.mxu0 0.0
    %78 = vmatpush.msra.mxu0 0.0
    %79 = vmatpush.msra.mxu0 0.0
    %80 = vmatpush.msra.mxu0 0.0
    %81 = vmatpush.msra.mxu0 0.0
    %82 = vmatpush.msra.mxu0 0.0
    %83 = vmatpush.msra.mxu0 0.0
    %84 = vmatpush.msra.mxu0 0.0
    %85 = vmatpush.msra.mxu0 0.0
    %86 = vmatpush.msra.mxu0 0.0
    %87 = vmatpush.msra.mxu0 0.0
    %88 = vmatpush.msra.mxu0 %v49
    %89 = vmatpush.msra.mxu0 %v48
    %90 = vmatpush.msra.mxu0 %v47
    %91 = vmatpush.msra.mxu0 %v46
    %92 = vmatmul.f32.gmra.mxu0 %v71
    %v93 = vpop.f32.mrf.mxu0
    %v94 = vadd.f32 %v68, %v93
    %95 = vmatmul.f32.gmra.mxu0 %v74
    %v96 = vpop.f32.mrf.mxu0
    %v97 = vadd.f32 %v68, %v96
    %98 = vdwg.mxu0
    %v99 = vmul.f32 %v94, 0.5
    %v100 = vmul.f32 %v97, 0.5
    %v101 = vmul.f32 %v94, 0.044715
    %v102 = vmul.f32 %v97, 0.044715
    %v103 = vmul.f32 %v101, %v94
    %v104 = vmul.f32 %v102, %v97
    %v105 = vmul.f32 %v103, %v94
    %v106 = vmul.f32 %v104, %v97
    %v107 = vadd.f32 %v94, %v105
    %v108 = vadd.f32 %v97, %v106
    %v109 = vmul.f32 %v107, 0.7978846
    %v110 = vmul.f32 %v108, 0.7978846
    %v111 = vtanh.pop %v109
    %v112 = vtanh.pop %v110
    %v113 = vadd.f32 %v111, 1.0
    %v114 = vadd.f32 %v112, 1.0
    %v115 = vmul.f32 %v99, %v113
    %v116 = vmul.f32 %v100, %v114
    %v117 = vperm.slane %v67, 0
    %118 = vmatpush.msra.mxu0 %v65
    %119 = vmatpush.msra.mxu0 %v64
    %120 = vmatpush.msra.mxu0 %v63
    %121 = vmatpush.msra.mxu0 %v62
    %122 = vmatpush.msra.mxu0 %v61
    %123 = vmatpush.msra.mxu0 %v60
    %124 = vmatpush.msra.mxu0 %v59
    %125 = vmatpush.msra.mxu0 %v58
    %126 = vmatpush.msra.mxu0 %v57
    %127 = vmatpush.msra.mxu0 %v56
    %128 = vmatpush.msra.mxu0 %v55
    %129 = vmatpush.msra.mxu0 %v54
    %130 = vmatpush.msra.mxu0 %v53
    %131 = vmatpush.msra.mxu0 %v52
    %132 = vmatpush.msra.mxu0 %v51
    %133 = vmatpush.msra.mxu0 %v50
    %134 = vmatmul.f32.gmra.mxu0 %v115
    %v135 = vpop.f32.mrf.mxu0
    %v136 = vadd.f32 %v117, %v135
    %137 = vmatmul.f32.gmra.mxu0 %v116
    %v138 = vpop.f32.mrf.mxu0
    %v139 = vadd.f32 %v117, %v138
    %140 = vdwg.mxu0
    %141 = vst [vmem:[#allocation7] sm:$0xff] %v136
    %142 = vst [vmem:[#allocation7 + $0x8] sm:$0xff] %v139
    // Predicated region
    $region18: #{tpu_custom_call.1} parent=1 // pred_check
      _
    $region19: #{tpu_custom_call.1} parent=1 // pred_check_branch
      %144 = sbr.rel (0) target = $region21
    $region20: #{tpu_custom_call.1} parent=1 // pred_region
      %146 = vsyncadd [#allocation4], 0
      %s147 = sshll.u32 [#allocation7], 4
      %s148 = int_to_ptr.vmem [resolvable:$true] %s147
      %s149 = sshll.u32 %s2, 4
      %s150 = int_to_ptr.hbm [resolvable:$true] %s149
      %155 = dma.vmem_to_hbm [thread:$0]  %s148, 256, %s150, [#allocation4], 128, 128, 8
    $region21: #{tpu_custom_call.1} parent=1 // pred_fallthru
      _
    // Predicated region
    $region22: #{tpu_custom_call.1} parent=1 // pred_check
      _
    $region23: #{tpu_custom_call.1} parent=1 // pred_check_branch
      %157 = sbr.rel (0) target = $region25
    $region24: #{tpu_custom_call.1} parent=1 // pred_region
      %159 = dma.done [#allocation4], 256
    $region25: #{tpu_custom_call.1} parent=1 // pred_fallthru
      _
    %160 = vsyncpa [#allocation3], 1
    %161 = vsyncpa [#allocation6], 1
    %162 = vsyncpa [#allocation4], 1

</llo_original>
